<compile_context>
chip_gen: v7x
topology: tpu7x:2x2x1
jax: 0.10.0
libtpu: 0.0.40
codegen_flags: <defaults>
</compile_context>

<pallas_src>
import functools

import jax
import jax.numpy as jnp
from jax.experimental import pallas as pl
from jax.experimental.pallas import tpu as pltpu

_LANES = 128
_SUBLANES = 8
# 1024x128 f32 block = 512 KiB; 8 double-buffered input streams < 8 MiB VMEM.
_MAX_BLOCK_ROWS = 1024

_FIELDS = ('boxes', 'scales', 'context_scores', 'confidence')

# Loss-neutral (pred_pad, target_pad) constants per field.  Padded elements
# contribute *exactly* 0 to their segment's sum:
#   smooth_l1(0, 0)          = 0
#   bce_with_logits(-1e4, 0) = max(-1e4,0) - (-1e4)*0 + log1p(exp(-1e4)) = 0
#   bce(1, 1)                = -(1*log(1) + 0*clamp(log(0))) = 0
_PAD_VALUES = {
    'boxes': (0.0, 0.0),
    'scales': (0.0, 0.0),
    'context_scores': (-1e4, 0.0),
    'confidence': (1.0, 1.0),
}


# ----------------------------- per-element formulas -------------------------
def _smooth_l1(p, t):
    d = p - t
    ad = jnp.abs(d)
    return jnp.where(ad < 1.0, 0.5 * d * d, ad - 0.5)


def _bce_with_logits(x, z):
    # Numerically stable; matches F.binary_cross_entropy_with_logits.
    return jnp.maximum(x, 0.0) - x * z + jnp.log1p(jnp.exp(-jnp.abs(x)))


def _bce_on_probs(p, t):
    # Matches F.binary_cross_entropy (log terms clamped at -100).
    log_p = jnp.maximum(jnp.log(p), -100.0)
    log_1mp = jnp.maximum(jnp.log1p(-p), -100.0)
    return -(t * log_p + (1.0 - t) * log_1mp)


# --------------------------------- kernel -----------------------------------
def _detection_loss_kernel(pb_ref, ps_ref, pc_ref, pf_ref,
                           tb_ref, ts_ref, tc_ref, tf_ref,
                           box_acc, scale_acc, ctx_acc, conf_acc,
                           *, metas):
    i = pl.program_id(0)

    @pl.when(i == 0)
    def _init():
        box_acc[...] = jnp.zeros_like(box_acc)
        scale_acc[...] = jnp.zeros_like(scale_acc)
        ctx_acc[...] = jnp.zeros_like(ctx_acc)
        conf_acc[...] = jnp.zeros_like(conf_acc)

    def _segment(p_ref, t_ref, acc_ref, meta, formula):
        start, nblk = meta

        @pl.when(jnp.logical_and(i >= start, i < start + nblk))
        def _():
            # Upcast in-kernel (inputs may be bf16/f16); HBM traffic stays narrow.
            p = p_ref[...].astype(jnp.float32)
            t = t_ref[...].astype(jnp.float32)
            val = formula(p, t)
            br = val.shape[0]
            # Fold the (br, 128) block into an (8, 128) partial with pure
            # cross-vreg VPU adds; the single cross-lane reduce is done once,
            # in the wrapper, on the tiny accumulator outputs.
            acc_ref[...] += val.reshape(
                br // _SUBLANES, _SUBLANES, _LANES).sum(axis=0)

    _segment(pb_ref, tb_ref, box_acc, metas[0], _smooth_l1)
    _segment(ps_ref, ts_ref, scale_acc, metas[1], _smooth_l1)
    _segment(pc_ref, tc_ref, ctx_acc, metas[2], _bce_with_logits)
    _segment(pf_ref, tf_ref, conf_acc, metas[3], _bce_on_probs)


# --------------------------------- wrapper ----------------------------------
def _round_up(x, m):
    return ((x + m - 1) // m) * m


def _pad_reshape(flat, rows, pad_value):
    """Pad (only if needed) to rows*128 with a loss-neutral constant, reshape."""
    want = rows * _LANES
    pad = want - int(flat.size)
    if pad:
        flat = jnp.concatenate(
            [flat, jnp.full((pad,), pad_value, dtype=flat.dtype)])
    return flat.reshape(rows, _LANES)


def detection_loss(predictions, targets, *,
                   box_weight=1.0, scale_weight=1.0,
                   context_weight=1.0, conf_weight=1.0,
                   max_block_rows=_MAX_BLOCK_ROWS):
    """Pallas-backed equivalent of DetectionLoss.forward (masks=None path).

    Note: an empty field divides by zero and yields NaN, matching torch's
    mean over an empty tensor.
    """
    max_block_rows = max(_SUBLANES, _round_up(max_block_rows, _SUBLANES))

    preds2d, tgts2d, pred_specs, tgt_specs = [], [], [], []
    metas, counts = [], []
    start = 0
    for name in _FIELDS:
        p_flat = jnp.ravel(predictions[name])
        t_flat = jnp.ravel(targets[name])
        size = int(p_flat.size)
        if int(t_flat.size) != size:
            raise ValueError(f"prediction/target size mismatch for '{name}'")

        rows = _round_up(max(-(-size // _LANES), 1), _SUBLANES)
        br = min(max_block_rows, rows)
        nblk = -(-rows // br)
        rows = nblk * br                      # blocks exactly tile the field

        pv_p, pv_t = _PAD_VALUES[name]
        preds2d.append(_pad_reshape(p_flat, rows, pv_p))
        tgts2d.append(_pad_reshape(t_flat, rows, pv_t))

        def idx_map(i, _s=start, _n=nblk):
            # Outside this field's block range the index is held constant, so
            # the pipeline never re-DMAs a block it is not going to use.
            return (jnp.clip(i - _s, 0, _n - 1), 0)

        pred_specs.append(pl.BlockSpec((br, _LANES), idx_map))
        tgt_specs.append(pl.BlockSpec((br, _LANES), idx_map))
        metas.append((start, nblk))
        counts.append(size)
        start += nblk

    total_blocks = start

    acc_sd = jax.ShapeDtypeStruct((_SUBLANES, _LANES), jnp.float32)
    out_specs = [pl.BlockSpec((_SUBLANES, _LANES), lambda i: (0, 0))
                 for _ in range(4)]

    n_trans_elems = counts[2] + counts[3]
    cost = pl.CostEstimate(
        flops=7 * (counts[0] + counts[1]) + 10 * n_trans_elems,
        transcendentals=2 * n_trans_elems,
        bytes_accessed=sum(int(a.size) * a.dtype.itemsize
                           for a in preds2d + tgts2d)
        + 4 * _SUBLANES * _LANES * 4,
    )

    kernel = functools.partial(_detection_loss_kernel, metas=tuple(metas))

    sums = pl.pallas_call(
        kernel,
        out_shape=(acc_sd, acc_sd, acc_sd, acc_sd),
        grid_spec=pltpu.PrefetchScalarGridSpec(
            num_scalar_prefetch=0,
            grid=(total_blocks,),
            in_specs=pred_specs + tgt_specs,
            out_specs=out_specs,
        ),
        compiler_params=pltpu.CompilerParams(
            dimension_semantics=("arbitrary",)),
        cost_estimate=cost,
    )(*preds2d, *tgts2d)

    # Tiny finalize (4x (8,128) reduces + weighting) in plain JAX.
    box_loss = jnp.sum(sums[0]) / counts[0]
    scale_loss = jnp.sum(sums[1]) / counts[1]
    context_loss = jnp.sum(sums[2]) / counts[2]
    conf_loss = jnp.sum(sums[3]) / counts[3]
    loss = (box_weight * box_loss + scale_weight * scale_loss
            + context_weight * context_loss + conf_weight * conf_loss)
    return {'loss': loss, 'box_loss': box_loss, 'scale_loss': scale_loss,
            'context_loss': context_loss, 'conf_loss': conf_loss}


class DetectionLoss:
    """Drop-in functional mirror of the PyTorch module (forward only)."""

    def __init__(self, box_weight=1.0, scale_weight=1.0,
                 context_weight=1.0, conf_weight=1.0):
        self.box_weight = box_weight
        self.scale_weight = scale_weight
        self.context_weight = context_weight
        self.conf_weight = conf_weight

    def __call__(self, predictions, targets, masks=None):
        if masks is not None:
            raise NotImplementedError(
                "masks fancy-indexing path not supported")  # TODO(synk)
        return detection_loss(predictions, targets,
                              box_weight=self.box_weight,
                              scale_weight=self.scale_weight,
                              context_weight=self.context_weight,
                              conf_weight=self.conf_weight)


# ------------------------------ verification --------------------------------
def _reference_loss(predictions, targets, *,
                    box_weight=1.0, scale_weight=1.0,
                    context_weight=1.0, conf_weight=1.0):
    """Pure-JAX reference mirroring the PyTorch semantics."""
    def smooth_l1(p, t):
        d = p - t
        ad = jnp.abs(d)
        return jnp.mean(jnp.where(ad < 1.0, 0.5 * d * d, ad - 0.5))

    box_loss = smooth_l1(predictions['boxes'], targets['boxes'])
    scale_loss = smooth_l1(predictions['scales'], targets['scales'])
    x, z = predictions['context_scores'], targets['context_scores']
    context_loss = jnp.mean(jnp.maximum(x, 0.0) - x * z
                            + jnp.log1p(jnp.exp(-jnp.abs(x))))
    p, t = predictions['confidence'], targets['confidence']
    conf_loss = jnp.mean(-(t * jnp.maximum(jnp.log(p), -100.0)
                           + (1.0 - t) * jnp.maximum(jnp.log1p(-p), -100.0)))
    total = (box_weight * box_loss + scale_weight * scale_loss
             + context_weight * context_loss + conf_weight * conf_loss)
    return {'loss': total, 'box_loss': box_loss, 'scale_loss': scale_loss,
            'context_loss': context_loss, 'conf_loss': conf_loss}


def _make_inputs(N, key):
    ks = jax.random.split(key, 8)
    predictions = {
        'boxes': jax.random.uniform(ks[0], (N, 4), jnp.float32),
        'scales': jax.random.uniform(ks[1], (N, 2), jnp.float32),
        'context_scores': jax.random.normal(ks[2], (N, 1), jnp.float32),
        'confidence': jax.nn.sigmoid(jax.random.normal(ks[3], (N, 1), jnp.float32)),
    }
    targets = {
        'boxes': jax.random.uniform(ks[4], (N, 4), jnp.float32),
        'scales': jax.random.uniform(ks[5], (N, 2), jnp.float32),
        'context_scores': jax.random.bernoulli(ks[6], 0.5, (N, 1)).astype(jnp.float32),
        'confidence': jax.random.bernoulli(ks[7], 0.5, (N, 1)).astype(jnp.float32),
    }
    return predictions, targets


def _check(out, ref, rtol, atol):
    for k in out:
        assert jnp.allclose(out[k], ref[k], rtol=rtol, atol=atol), \
            (k, out[k], ref[k])


if __name__ == "__main__":
    key = jax.random.PRNGKey(0)
    k1, k2, k3 = jax.random.split(key, 3)

    # Small case (single block per field, heavy padding), non-trivial weights.
    preds, tgts = _make_inputs(8, k1)
    out = detection_loss(preds, tgts, box_weight=1.5, scale_weight=0.5,
                         context_weight=2.0, conf_weight=1.0)
    out = jax.tree_util.tree_map(jax.block_until_ready, out)
    ref = _reference_loss(preds, tgts, box_weight=1.5, scale_weight=0.5,
                          context_weight=2.0, conf_weight=1.0)
    _check(out, ref, rtol=1e-5, atol=1e-5)

    # Odd size: exercises ragged lane-tail neutral padding on every field.
    preds, tgts = _make_inputs(1003, k2)
    loss_mod = DetectionLoss()
    out = loss_mod(preds, tgts)
    out = jax.tree_util.tree_map(jax.block_until_ready, out)
    ref = _reference_loss(preds, tgts)
    _check(out, ref, rtol=1e-4, atol=1e-5)

    # Multi-block grid: small block rows force several blocks per segment,
    # exercising the clamped index maps and cross-block accumulation.
    preds, tgts = _make_inputs(5000, k3)
    out = detection_loss(preds, tgts, max_block_rows=64)
    out = jax.tree_util.tree_map(jax.block_until_ready, out)
    ref = _reference_loss(preds, tgts)
    _check(out, ref, rtol=1e-4, atol=1e-5)

    print("KERNEL_OK")
</pallas_src>

<mosaic_0001>
module attributes {stable_mosaic.version = 11 : i64} {
  func.func @_detection_loss_kernel(%arg0: i32, %arg1: memref<8x128xf32, #tpu.memory_space<vmem>>, %arg2: memref<8x128xf32, #tpu.memory_space<vmem>>, %arg3: memref<8x128xf32, #tpu.memory_space<vmem>>, %arg4: memref<8x128xf32, #tpu.memory_space<vmem>>, %arg5: memref<8x128xf32, #tpu.memory_space<vmem>>, %arg6: memref<8x128xf32, #tpu.memory_space<vmem>>, %arg7: memref<8x128xf32, #tpu.memory_space<vmem>>, %arg8: memref<8x128xf32, #tpu.memory_space<vmem>>, %arg9: memref<8x128xf32, #tpu.memory_space<vmem>>, %arg10: memref<8x128xf32, #tpu.memory_space<vmem>>, %arg11: memref<8x128xf32, #tpu.memory_space<vmem>>, %arg12: memref<8x128xf32, #tpu.memory_space<vmem>>) attributes {dimension_semantics = [#tpu.dimension_semantics<arbitrary>], iteration_bounds = array<i64: 4>, scalar_prefetch = 0 : i64, scratch_operands = 0 : i64, tpu.core_type = #tpu.core_type<tc>, window_params = [{transform_indices = @transform_0, window_bounds = array<i64: 8, 128>}, {transform_indices = @transform_1, window_bounds = array<i64: 8, 128>}, {transform_indices = @transform_2, window_bounds = array<i64: 8, 128>}, {transform_indices = @transform_3, window_bounds = array<i64: 8, 128>}, {transform_indices = @transform_4, window_bounds = array<i64: 8, 128>}, {transform_indices = @transform_5, window_bounds = array<i64: 8, 128>}, {transform_indices = @transform_6, window_bounds = array<i64: 8, 128>}, {transform_indices = @transform_7, window_bounds = array<i64: 8, 128>}, {pipeline_mode = #tpu.pipeline_mode<synchronous>, transform_indices = @transform_8, window_bounds = array<i64: 8, 128>}, {pipeline_mode = #tpu.pipeline_mode<synchronous>, transform_indices = @transform_9, window_bounds = array<i64: 8, 128>}, {pipeline_mode = #tpu.pipeline_mode<synchronous>, transform_indices = @transform_10, window_bounds = array<i64: 8, 128>}, {pipeline_mode = #tpu.pipeline_mode<synchronous>, transform_indices = @transform_11, window_bounds = array<i64: 8, 128>}]} {
    %c0_i32 = arith.constant 0 : i32
    %0 = arith.cmpi eq, %arg0, %c0_i32 : i32
    %1 = arith.extui %0 : i1 to i32
    %c0_i32_0 = arith.constant 0 : i32
    %2 = arith.cmpi ne, %1, %c0_i32_0 : i32
    scf.if %2 {
      %cst = arith.constant 0.000000e+00 : f32
      %23 = vector.broadcast %cst : f32 to vector<8x128xf32>
      %c0 = arith.constant 0 : index
      %c0_9 = arith.constant 0 : index
      %24 = vector.load %arg9[%c0, %c0_9] : memref<8x128xf32, #tpu.memory_space<vmem>>, vector<8x128xf32>
      tpu.vector_store %arg9[%c0, %c0_9], %23 {strides = array<i32>} : memref<8x128xf32, #tpu.memory_space<vmem>>, vector<8x128xf32>,
      %cst_10 = arith.constant 0.000000e+00 : f32
      %25 = vector.broadcast %cst_10 : f32 to vector<8x128xf32>
      %c0_11 = arith.constant 0 : index
      %c0_12 = arith.constant 0 : index
      %26 = vector.load %arg10[%c0_11, %c0_12] : memref<8x128xf32, #tpu.memory_space<vmem>>, vector<8x128xf32>
      tpu.vector_store %arg10[%c0_11, %c0_12], %25 {strides = array<i32>} : memref<8x128xf32, #tpu.memory_space<vmem>>, vector<8x128xf32>,
      %cst_13 = arith.constant 0.000000e+00 : f32
      %27 = vector.broadcast %cst_13 : f32 to vector<8x128xf32>
      %c0_14 = arith.constant 0 : index
      %c0_15 = arith.constant 0 : index
      %28 = vector.load %arg11[%c0_14, %c0_15] : memref<8x128xf32, #tpu.memory_space<vmem>>, vector<8x128xf32>
      tpu.vector_store %arg11[%c0_14, %c0_15], %27 {strides = array<i32>} : memref<8x128xf32, #tpu.memory_space<vmem>>, vector<8x128xf32>,
      %cst_16 = arith.constant 0.000000e+00 : f32
      %29 = vector.broadcast %cst_16 : f32 to vector<8x128xf32>
      %c0_17 = arith.constant 0 : index
      %c0_18 = arith.constant 0 : index
      %30 = vector.load %arg12[%c0_17, %c0_18] : memref<8x128xf32, #tpu.memory_space<vmem>>, vector<8x128xf32>
      tpu.vector_store %arg12[%c0_17, %c0_18], %29 {strides = array<i32>} : memref<8x128xf32, #tpu.memory_space<vmem>>, vector<8x128xf32>,
    } else {
    }
    %c0_i32_1 = arith.constant 0 : i32
    %3 = arith.cmpi sge, %arg0, %c0_i32_1 : i32
    %c1_i32 = arith.constant 1 : i32
    %4 = arith.cmpi slt, %arg0, %c1_i32 : i32
    %5 = arith.andi %3, %4 : i1
    %6 = arith.extui %5 : i1 to i32
    %c0_i32_2 = arith.constant 0 : i32
    %7 = arith.cmpi ne, %6, %c0_i32_2 : i32
    scf.if %7 {
      %c0 = arith.constant 0 : index
      %c0_9 = arith.constant 0 : index
      %23 = vector.load %arg1[%c0, %c0_9] : memref<8x128xf32, #tpu.memory_space<vmem>>, vector<8x128xf32>
      %c0_10 = arith.constant 0 : index
      %c0_11 = arith.constant 0 : index
      %24 = vector.load %arg5[%c0_10, %c0_11] : memref<8x128xf32, #tpu.memory_space<vmem>>, vector<8x128xf32>
      %25 = arith.subf %23, %24 : vector<8x128xf32>
      %26 = math.absf %25 : vector<8x128xf32>
      %cst = arith.constant 1.000000e+00 : f32
      %27 = vector.broadcast %cst : f32 to vector<8x128xf32>
      %28 = arith.cmpf olt, %26, %27 : vector<8x128xf32>
      %cst_12 = arith.constant 5.000000e-01 : f32
      %29 = vector.broadcast %cst_12 : f32 to vector<8x128xf32>
      %30 = arith.mulf %29, %25 : vector<8x128xf32>
      %31 = arith.mulf %30, %25 : vector<8x128xf32>
      %cst_13 = arith.constant 5.000000e-01 : f32
      %32 = vector.broadcast %cst_13 : f32 to vector<8x128xf32>
      %33 = arith.subf %26, %32 : vector<8x128xf32>
      %34 = arith.select %28, %31, %33 : vector<8x128xi1>, vector<8x128xf32>
      %c0_14 = arith.constant 0 : index
      %c0_15 = arith.constant 0 : index
      %35 = vector.load %arg9[%c0_14, %c0_15] : memref<8x128xf32, #tpu.memory_space<vmem>>, vector<8x128xf32>
      %36 = vector.shape_cast %34 : vector<8x128xf32> to vector<1x8x128xf32>
      %cst_16 = arith.constant dense<0.000000e+00> : vector<8x128xf32>
      %37 = vector.multi_reduction <add>, %36, %cst_16 [0] : vector<1x8x128xf32> to vector<8x128xf32>
      %38 = arith.addf %35, %37 : vector<8x128xf32>
      %c0_17 = arith.constant 0 : index
      %c0_18 = arith.constant 0 : index
      %39 = vector.load %arg9[%c0_17, %c0_18] : memref<8x128xf32, #tpu.memory_space<vmem>>, vector<8x128xf32>
      tpu.vector_store %arg9[%c0_17, %c0_18], %38 {strides = array<i32>} : memref<8x128xf32, #tpu.memory_space<vmem>>, vector<8x128xf32>,
    } else {
    }
    %c1_i32_3 = arith.constant 1 : i32
    %8 = arith.cmpi sge, %arg0, %c1_i32_3 : i32
    %c2_i32 = arith.constant 2 : i32
    %9 = arith.cmpi slt, %arg0, %c2_i32 : i32
    %10 = arith.andi %8, %9 : i1
    %11 = arith.extui %10 : i1 to i32
    %c0_i32_4 = arith.constant 0 : i32
    %12 = arith.cmpi ne, %11, %c0_i32_4 : i32
    scf.if %12 {
      %c0 = arith.constant 0 : index
      %c0_9 = arith.constant 0 : index
      %23 = vector.load %arg2[%c0, %c0_9] : memref<8x128xf32, #tpu.memory_space<vmem>>, vector<8x128xf32>
      %c0_10 = arith.constant 0 : index
      %c0_11 = arith.constant 0 : index
      %24 = vector.load %arg6[%c0_10, %c0_11] : memref<8x128xf32, #tpu.memory_space<vmem>>, vector<8x128xf32>
      %25 = arith.subf %23, %24 : vector<8x128xf32>
      %26 = math.absf %25 : vector<8x128xf32>
      %cst = arith.constant 1.000000e+00 : f32
      %27 = vector.broadcast %cst : f32 to vector<8x128xf32>
      %28 = arith.cmpf olt, %26, %27 : vector<8x128xf32>
      %cst_12 = arith.constant 5.000000e-01 : f32
      %29 = vector.broadcast %cst_12 : f32 to vector<8x128xf32>
      %30 = arith.mulf %29, %25 : vector<8x128xf32>
      %31 = arith.mulf %30, %25 : vector<8x128xf32>
      %cst_13 = arith.constant 5.000000e-01 : f32
      %32 = vector.broadcast %cst_13 : f32 to vector<8x128xf32>
      %33 = arith.subf %26, %32 : vector<8x128xf32>
      %34 = arith.select %28, %31, %33 : vector<8x128xi1>, vector<8x128xf32>
      %c0_14 = arith.constant 0 : index
      %c0_15 = arith.constant 0 : index
      %35 = vector.load %arg10[%c0_14, %c0_15] : memref<8x128xf32, #tpu.memory_space<vmem>>, vector<8x128xf32>
      %36 = vector.shape_cast %34 : vector<8x128xf32> to vector<1x8x128xf32>
      %cst_16 = arith.constant dense<0.000000e+00> : vector<8x128xf32>
      %37 = vector.multi_reduction <add>, %36, %cst_16 [0] : vector<1x8x128xf32> to vector<8x128xf32>
      %38 = arith.addf %35, %37 : vector<8x128xf32>
      %c0_17 = arith.constant 0 : index
      %c0_18 = arith.constant 0 : index
      %39 = vector.load %arg10[%c0_17, %c0_18] : memref<8x128xf32, #tpu.memory_space<vmem>>, vector<8x128xf32>
      tpu.vector_store %arg10[%c0_17, %c0_18], %38 {strides = array<i32>} : memref<8x128xf32, #tpu.memory_space<vmem>>, vector<8x128xf32>,
    } else {
    }
    %c2_i32_5 = arith.constant 2 : i32
    %13 = arith.cmpi sge, %arg0, %c2_i32_5 : i32
    %c3_i32 = arith.constant 3 : i32
    %14 = arith.cmpi slt, %arg0, %c3_i32 : i32
    %15 = arith.andi %13, %14 : i1
    %16 = arith.extui %15 : i1 to i32
    %c0_i32_6 = arith.constant 0 : i32
    %17 = arith.cmpi ne, %16, %c0_i32_6 : i32
    scf.if %17 {
      %c0 = arith.constant 0 : index
      %c0_9 = arith.constant 0 : index
      %23 = vector.load %arg3[%c0, %c0_9] : memref<8x128xf32, #tpu.memory_space<vmem>>, vector<8x128xf32>
      %c0_10 = arith.constant 0 : index
      %c0_11 = arith.constant 0 : index
      %24 = vector.load %arg7[%c0_10, %c0_11] : memref<8x128xf32, #tpu.memory_space<vmem>>, vector<8x128xf32>
      %cst = arith.constant 0.000000e+00 : f32
      %25 = vector.broadcast %cst : f32 to vector<8x128xf32>
      %26 = arith.maximumf %23, %25 : vector<8x128xf32>
      %27 = arith.mulf %23, %24 : vector<8x128xf32>
      %28 = arith.subf %26, %27 : vector<8x128xf32>
      %29 = math.absf %23 : vector<8x128xf32>
      %cst_12 = arith.constant 0.000000e+00 : f32
      %30 = vector.broadcast %cst_12 : f32 to vector<8x128xf32>
      %31 = arith.subf %30, %29 : vector<8x128xf32>
      %32 = math.exp %31 : vector<8x128xf32>
      %33 = math.log1p %32 : vector<8x128xf32>
      %34 = arith.addf %28, %33 : vector<8x128xf32>
      %c0_13 = arith.constant 0 : index
      %c0_14 = arith.constant 0 : index
      %35 = vector.load %arg11[%c0_13, %c0_14] : memref<8x128xf32, #tpu.memory_space<vmem>>, vector<8x128xf32>
      %36 = vector.shape_cast %34 : vector<8x128xf32> to vector<1x8x128xf32>
      %cst_15 = arith.constant dense<0.000000e+00> : vector<8x128xf32>
      %37 = vector.multi_reduction <add>, %36, %cst_15 [0] : vector<1x8x128xf32> to vector<8x128xf32>
      %38 = arith.addf %35, %37 : vector<8x128xf32>
      %c0_16 = arith.constant 0 : index
      %c0_17 = arith.constant 0 : index
      %39 = vector.load %arg11[%c0_16, %c0_17] : memref<8x128xf32, #tpu.memory_space<vmem>>, vector<8x128xf32>
      tpu.vector_store %arg11[%c0_16, %c0_17], %38 {strides = array<i32>} : memref<8x128xf32, #tpu.memory_space<vmem>>, vector<8x128xf32>,
    } else {
    }
    %c3_i32_7 = arith.constant 3 : i32
    %18 = arith.cmpi sge, %arg0, %c3_i32_7 : i32
    %c4_i32 = arith.constant 4 : i32
    %19 = arith.cmpi slt, %arg0, %c4_i32 : i32
    %20 = arith.andi %18, %19 : i1
    %21 = arith.extui %20 : i1 to i32
    %c0_i32_8 = arith.constant 0 : i32
    %22 = arith.cmpi ne, %21, %c0_i32_8 : i32
    scf.if %22 {
      %c0 = arith.constant 0 : index
      %c0_9 = arith.constant 0 : index
      %23 = vector.load %arg4[%c0, %c0_9] : memref<8x128xf32, #tpu.memory_space<vmem>>, vector<8x128xf32>
      %c0_10 = arith.constant 0 : index
      %c0_11 = arith.constant 0 : index
      %24 = vector.load %arg8[%c0_10, %c0_11] : memref<8x128xf32, #tpu.memory_space<vmem>>, vector<8x128xf32>
      %25 = math.log %23 : vector<8x128xf32>
      %cst = arith.constant -1.000000e+02 : f32
      %26 = vector.broadcast %cst : f32 to vector<8x128xf32>
      %27 = arith.maximumf %25, %26 : vector<8x128xf32>
      %cst_12 = arith.constant 0.000000e+00 : f32
      %28 = vector.broadcast %cst_12 : f32 to vector<8x128xf32>
      %29 = arith.subf %28, %23 : vector<8x128xf32>
      %30 = math.log1p %29 : vector<8x128xf32>
      %cst_13 = arith.constant -1.000000e+02 : f32
      %31 = vector.broadcast %cst_13 : f32 to vector<8x128xf32>
      %32 = arith.maximumf %30, %31 : vector<8x128xf32>
      %33 = arith.mulf %24, %27 : vector<8x128xf32>
      %cst_14 = arith.constant 1.000000e+00 : f32
      %34 = vector.broadcast %cst_14 : f32 to vector<8x128xf32>
      %35 = arith.subf %34, %24 : vector<8x128xf32>
      %36 = arith.mulf %35, %32 : vector<8x128xf32>
      %37 = arith.addf %33, %36 : vector<8x128xf32>
      %cst_15 = arith.constant 0.000000e+00 : f32
      %38 = vector.broadcast %cst_15 : f32 to vector<8x128xf32>
      %39 = arith.subf %38, %37 : vector<8x128xf32>
      %c0_16 = arith.constant 0 : index
      %c0_17 = arith.constant 0 : index
      %40 = vector.load %arg12[%c0_16, %c0_17] : memref<8x128xf32, #tpu.memory_space<vmem>>, vector<8x128xf32>
      %41 = vector.shape_cast %39 : vector<8x128xf32> to vector<1x8x128xf32>
      %cst_18 = arith.constant dense<0.000000e+00> : vector<8x128xf32>
      %42 = vector.multi_reduction <add>, %41, %cst_18 [0] : vector<1x8x128xf32> to vector<8x128xf32>
      %43 = arith.addf %40, %42 : vector<8x128xf32>
      %c0_19 = arith.constant 0 : index
      %c0_20 = arith.constant 0 : index
      %44 = vector.load %arg12[%c0_19, %c0_20] : memref<8x128xf32, #tpu.memory_space<vmem>>, vector<8x128xf32>
      tpu.vector_store %arg12[%c0_19, %c0_20], %43 {strides = array<i32>} : memref<8x128xf32, #tpu.memory_space<vmem>>, vector<8x128xf32>,
    } else {
    }
    return
  }
  func.func @transform_0(%arg0: i32) -> (i32, i32) {
    %c0_i32 = arith.constant 0 : i32
    %0 = arith.subi %arg0, %c0_i32 : i32
    %c0_i32_0 = arith.constant 0 : i32
    %c0_i32_1 = arith.constant 0 : i32
    %1 = arith.maxsi %c0_i32_0, %0 : i32
    %2 = arith.minsi %c0_i32_1, %1 : i32
    %c0_i32_2 = arith.constant 0 : i32
    %c0_i32_3 = arith.constant 0 : i32
    return %2, %c0_i32_2 : i32, i32
  }
  func.func @transform_1(%arg0: i32) -> (i32, i32) {
    %c1_i32 = arith.constant 1 : i32
    %0 = arith.subi %arg0, %c1_i32 : i32
    %c0_i32 = arith.constant 0 : i32
    %c0_i32_0 = arith.constant 0 : i32
    %1 = arith.maxsi %c0_i32, %0 : i32
    %2 = arith.minsi %c0_i32_0, %1 : i32
    %c0_i32_1 = arith.constant 0 : i32
    %c0_i32_2 = arith.constant 0 : i32
    return %2, %c0_i32_1 : i32, i32
  }
  func.func @transform_2(%arg0: i32) -> (i32, i32) {
    %c2_i32 = arith.constant 2 : i32
    %0 = arith.subi %arg0, %c2_i32 : i32
    %c0_i32 = arith.constant 0 : i32
    %c0_i32_0 = arith.constant 0 : i32
    %1 = arith.maxsi %c0_i32, %0 : i32
    %2 = arith.minsi %c0_i32_0, %1 : i32
    %c0_i32_1 = arith.constant 0 : i32
    %c0_i32_2 = arith.constant 0 : i32
    return %2, %c0_i32_1 : i32, i32
  }
  func.func @transform_3(%arg0: i32) -> (i32, i32) {
    %c3_i32 = arith.constant 3 : i32
    %0 = arith.subi %arg0, %c3_i32 : i32
    %c0_i32 = arith.constant 0 : i32
    %c0_i32_0 = arith.constant 0 : i32
    %1 = arith.maxsi %c0_i32, %0 : i32
    %2 = arith.minsi %c0_i32_0, %1 : i32
    %c0_i32_1 = arith.constant 0 : i32
    %c0_i32_2 = arith.constant 0 : i32
    return %2, %c0_i32_1 : i32, i32
  }
  func.func @transform_4(%arg0: i32) -> (i32, i32) {
    %c0_i32 = arith.constant 0 : i32
    %0 = arith.subi %arg0, %c0_i32 : i32
    %c0_i32_0 = arith.constant 0 : i32
    %c0_i32_1 = arith.constant 0 : i32
    %1 = arith.maxsi %c0_i32_0, %0 : i32
    %2 = arith.minsi %c0_i32_1, %1 : i32
    %c0_i32_2 = arith.constant 0 : i32
    %c0_i32_3 = arith.constant 0 : i32
    return %2, %c0_i32_2 : i32, i32
  }
  func.func @transform_5(%arg0: i32) -> (i32, i32) {
    %c1_i32 = arith.constant 1 : i32
    %0 = arith.subi %arg0, %c1_i32 : i32
    %c0_i32 = arith.constant 0 : i32
    %c0_i32_0 = arith.constant 0 : i32
    %1 = arith.maxsi %c0_i32, %0 : i32
    %2 = arith.minsi %c0_i32_0, %1 : i32
    %c0_i32_1 = arith.constant 0 : i32
    %c0_i32_2 = arith.constant 0 : i32
    return %2, %c0_i32_1 : i32, i32
  }
  func.func @transform_6(%arg0: i32) -> (i32, i32) {
    %c2_i32 = arith.constant 2 : i32
    %0 = arith.subi %arg0, %c2_i32 : i32
    %c0_i32 = arith.constant 0 : i32
    %c0_i32_0 = arith.constant 0 : i32
    %1 = arith.maxsi %c0_i32, %0 : i32
    %2 = arith.minsi %c0_i32_0, %1 : i32
    %c0_i32_1 = arith.constant 0 : i32
    %c0_i32_2 = arith.constant 0 : i32
    return %2, %c0_i32_1 : i32, i32
  }
  func.func @transform_7(%arg0: i32) -> (i32, i32) {
    %c3_i32 = arith.constant 3 : i32
    %0 = arith.subi %arg0, %c3_i32 : i32
    %c0_i32 = arith.constant 0 : i32
    %c0_i32_0 = arith.constant 0 : i32
    %1 = arith.maxsi %c0_i32, %0 : i32
    %2 = arith.minsi %c0_i32_0, %1 : i32
    %c0_i32_1 = arith.constant 0 : i32
    %c0_i32_2 = arith.constant 0 : i32
    return %2, %c0_i32_1 : i32, i32
  }
  func.func @transform_8(%arg0: i32) -> (i32, i32) {
    %c0_i32 = arith.constant 0 : i32
    %c0_i32_0 = arith.constant 0 : i32
    %c0_i32_1 = arith.constant 0 : i32
    return %c0_i32, %c0_i32_0 : i32, i32
  }
  func.func @transform_9(%arg0: i32) -> (i32, i32) {
    %c0_i32 = arith.constant 0 : i32
    %c0_i32_0 = arith.constant 0 : i32
    %c0_i32_1 = arith.constant 0 : i32
    return %c0_i32, %c0_i32_0 : i32, i32
  }
  func.func @transform_10(%arg0: i32) -> (i32, i32) {
    %c0_i32 = arith.constant 0 : i32
    %c0_i32_0 = arith.constant 0 : i32
    %c0_i32_1 = arith.constant 0 : i32
    return %c0_i32, %c0_i32_0 : i32, i32
  }
  func.func @transform_11(%arg0: i32) -> (i32, i32) {
    %c0_i32 = arith.constant 0 : i32
    %c0_i32_0 = arith.constant 0 : i32
    %c0_i32_1 = arith.constant 0 : i32
    return %c0_i32, %c0_i32_0 : i32, i32
  }
}

</mosaic_0001>

<llo_original>
// kernel: tpu_custom_call.1
$region0: #{tpu_custom_call.1}
  #allocation0 [shape = 'u32[]', space=smem, size = 0x4, offset = 0x4, fixed_abs, tag = 'smem constant byte address 0x4 - core index']
  #allocation1 [shape = 'u32[144,128]{1,0:T(1,128)}', space=vmem, size = 0x12000, scoped, tag = 'internal scratch']
  %s0 = inlined_call_operand.hbm [shape: f32[8,128], index: 0, kind: input, shape index: {}]
  %s1 = inlined_call_operand.hbm [shape: f32[8,128], index: 1, kind: input, shape index: {}]
  %s2 = inlined_call_operand.hbm [shape: f32[8,128], index: 2, kind: input, shape index: {}]
  %s3 = inlined_call_operand.vmem [shape: f32[8,128], index: 3, kind: input, shape index: {}]
  %s4 = inlined_call_operand.hbm [shape: f32[8,128], index: 4, kind: input, shape index: {}]
  %s5 = inlined_call_operand.vmem [shape: f32[8,128], index: 5, kind: input, shape index: {}]
  %s6 = inlined_call_operand.hbm [shape: f32[8,128], index: 6, kind: input, shape index: {}]
  %s7 = inlined_call_operand.vmem [shape: f32[8,128], index: 7, kind: input, shape index: {}]
  %s8 = inlined_call_operand.hbm [shape: f32[8,128], index: 8, kind: output, shape index: {0}]
  %s9 = inlined_call_operand.hbm [shape: f32[8,128], index: 9, kind: output, shape index: {1}]
  %s10 = inlined_call_operand.hbm [shape: f32[8,128], index: 10, kind: output, shape index: {2}]
  %s11 = inlined_call_operand.hbm [shape: f32[8,128], index: 11, kind: output, shape index: {3}]
  %12 = xla_tuple %s8, %s9, %s10, %s11
  %s13 = sld [smem:[#allocation0]]
  $region129: #{tpu_custom_call.1} parent=0
    _
  %s15 = ssub.s32 1, %s13
  %s16 = scalar_select 0, %s15, %s13
  $region1: #{tpu_custom_call.1} parent=0
    #allocation2 [shape = 'u8[8192]{0}', space=vmem, size = 0x2000, scoped, tag = 'input window, operand 0']
    #allocation3 [shape = 's32[2]{0}', space=sflag, size = 0x8, scoped, tag = 'scoped memory for tpu_custom_call.1']
    #allocation4 [shape = 's32[2]{0}', space=sflag, size = 0x8, scoped, tag = 'scoped memory for tpu_custom_call.1']
    #allocation5 [shape = 'u8[8192]{0}', space=vmem, size = 0x2000, scoped, tag = 'input window, operand 1']
    #allocation6 [shape = 's32[2]{0}', space=sflag, size = 0x8, scoped, tag = 'scoped memory for tpu_custom_call.1']
    #allocation7 [shape = 'u8[8192]{0}', space=vmem, size = 0x2000, scoped, tag = 'input window, operand 2']
    #allocation8 [shape = 'u8[8192]{0}', space=vmem, size = 0x2000, scoped, tag = 'input window, operand 4']
    #allocation9 [shape = 's32[2]{0}', space=sflag, size = 0x8, scoped, tag = 'scoped memory for tpu_custom_call.1']
    #allocation10 [shape = 'u8[8192]{0}', space=vmem, size = 0x2000, scoped, tag = 'input window, operand 6']
    #allocation11 [shape = 'u8[4096]{0}', space=vmem, size = 0x1000, scoped, tag = 'output window, operand 0, single buffered']
    #allocation12 [shape = 'u8[4096]{0}', space=vmem, size = 0x1000, scoped, tag = 'output window, operand 1, single buffered']
    #allocation13 [shape = 's32[1]{0}', space=sflag, size = 0x4, scoped, tag = 'scoped memory for tpu_custom_call.1']
    #allocation14 [shape = 'u8[4096]{0}', space=vmem, size = 0x1000, scoped, tag = 'output window, operand 2, single buffered']
    #allocation15 [shape = 'u8[4096]{0}', space=vmem, size = 0x1000, scoped, tag = 'output window, operand 3, single buffered']
    #allocation16 [shape = 's32[1]{0}', space=sflag, size = 0x4, scoped, tag = 'scoped memory for tpu_custom_call.1']
    %17 = vsyncpa [#allocation3], 0
    %s18 = scalar_lea.sflag [#allocation3], 1
    %19 = vsyncpa %s18, 0
    %20 = vsyncpa [#allocation6], 0
    %s21 = scalar_lea.sflag [#allocation6], 1
    %22 = vsyncpa %s21, 0
    %23 = vsyncpa [#allocation9], 0
    %s24 = scalar_lea.sflag [#allocation9], 1
    %25 = vsyncpa %s24, 0
    %26 = vsyncpa [#allocation4], 0
    %27 = vsyncpa [#allocation13], 0
    %28 = vsyncpa [#allocation16], 0
    loop: start=0, step=1, limit=6
    $region2: #{tpu_custom_call.1} parent=1 // loop_pre_header
      _
    $region3: #{tpu_custom_call.1} parent=1 // loop_header
      %s30 = sphi 0, %s34
      %p31 = scmp.ge.s32.totalorder %s30, 6
      %s48 = sphi 0, %s50
      %s51 = sphi 0, %s48
      %s52 = sphi 0, %s51
      %s68 = sphi 0, %s52
      %s84 = sphi 0, %s86
      %s87 = sphi 0, %s84
      %s88 = sphi 0, %s87
      %s104 = sphi 0, %s88
      %s120 = sphi 0, %s122
      %s123 = sphi 0, %s120
      %s124 = sphi 0, %s123
      %s140 = sphi 0, %s124
      %s156 = sphi 0, %s158
      %s159 = sphi 0, %s156
      %s160 = sphi 0, %s159
      %s176 = sphi 0, %s160
      %s190 = sphi 0, %s192
      %s193 = sphi 0, %s190
      %s194 = sphi 0, %s193
      %s210 = sphi 0, %s194
      %s226 = sphi 0, %s228
      %s229 = sphi 0, %s226
      %s230 = sphi 0, %s229
      %s246 = sphi 0, %s230
      %s262 = sphi 0, %s264
      %s265 = sphi 0, %s262
      %s266 = sphi 0, %s265
      %s282 = sphi 0, %s266
      %s298 = sphi 0, %s300
      %s301 = sphi 0, %s298
      %s302 = sphi 0, %s301
      %s318 = sphi 0, %s302
      %s322 = sphi 0, %s322
      %s324 = sphi 0, %s322
      %s325 = sphi 0, %s324
      %s339 = sphi 0, %s325
      %s343 = sphi 0, %s343
      %s345 = sphi 0, %s343
      %s346 = sphi 0, %s345
      %s360 = sphi 0, %s346
      %s364 = sphi 0, %s364
      %s366 = sphi 0, %s364
      %s367 = sphi 0, %s366
      %s381 = sphi 0, %s367
      %s385 = sphi 0, %s385
      %s387 = sphi 0, %s385
      %s388 = sphi 0, %s387
      %s402 = sphi 0, %s388
    $region4: #{tpu_custom_call.1} parent=1 // loop_header_branch
      %33 = sbr.rel (%p31) target = $region8
    $region5: #{tpu_custom_call.1} parent=1 // loop_body
      %s35 = ssub.s32 %s30, 1
      %s36 = ssub.s32 %s30, 2
      %s37 = sadd.s32 %s30, 1
      %p38 = scmp.gt.s32.totalorder %s30, 0
      %s39 = scalar_select %p38, %s30, 0
      %p40 = scmp.lt.s32.totalorder %s39, 0
      %s41 = scalar_select %p40, %s39, 0
      %p42 = scmp.gt.s32.totalorder %s37, 0
      %s43 = scalar_select %p42, %s37, 0
      %p44 = scmp.lt.s32.totalorder %s43, 0
      %s45 = scalar_select %p44, %s43, 0
      %s46 = ssub.s32 %s41, %s45
      %p47 = scmp.eq.s32.totalorder %s46, 0
      %s49 = sadd.s32 %s48, 1
      %s50 = scalar_select %p47, %s48, %s49
      %p53 = pneg %p47
      %p54 = scmp.eq.s32.totalorder %s30, 3
      %p55 = por %p53, %p54
      %p56 = scmp.ne.s32.totalorder %s48, %s51
      %p57 = scmp.eq.s32.totalorder %s30, 0
      %p58 = por %p56, %p57
      %p59 = scmp.ne.s32.totalorder %s48, %s51
      %p60 = scmp.eq.s32.totalorder %s35, 3
      %p61 = por %p59, %p60
      %p62 = scmp.ne.s32.totalorder %s51, %s52
      %p63 = scmp.eq.s32.totalorder %s35, 0
      %p64 = por %p62, %p63
      %p65 = scmp.ne.s32.totalorder %s51, %s52
      %p66 = scmp.eq.s32.totalorder %s36, 3
      %p67 = por %p65, %p66
      %p69 = scmp.ne.s32.totalorder %s52, %s68
      %p70 = scmp.eq.s32.totalorder %s36, 0
      %p71 = por %p69, %p70
      %s72 = ssub.s32 %s30, 1
      %p73 = scmp.gt.s32.totalorder %s72, 0
      %s74 = scalar_select %p73, %s72, 0
      %p75 = scmp.lt.s32.totalorder %s74, 0
      %s76 = scalar_select %p75, %s74, 0
      %s77 = ssub.s32 %s37, 1
      %p78 = scmp.gt.s32.totalorder %s77, 0
      %s79 = scalar_select %p78, %s77, 0
      %p80 = scmp.lt.s32.totalorder %s79, 0
      %s81 = scalar_select %p80, %s79, 0
      %s82 = ssub.s32 %s76, %s81
      %p83 = scmp.eq.s32.totalorder %s82, 0
      %s85 = sadd.s32 %s84, 1
      %s86 = scalar_select %p83, %s84, %s85
      %p89 = pneg %p83
      %p90 = scmp.eq.s32.totalorder %s30, 3
      %p91 = por %p89, %p90
      %p92 = scmp.ne.s32.totalorder %s84, %s87
      %p93 = scmp.eq.s32.totalorder %s30, 0
      %p94 = por %p92, %p93
      %p95 = scmp.ne.s32.totalorder %s84, %s87
      %p96 = scmp.eq.s32.totalorder %s35, 3
      %p97 = por %p95, %p96
      %p98 = scmp.ne.s32.totalorder %s87, %s88
      %p99 = scmp.eq.s32.totalorder %s35, 0
      %p100 = por %p98, %p99
      %p101 = scmp.ne.s32.totalorder %s87, %s88
      %p102 = scmp.eq.s32.totalorder %s36, 3
      %p103 = por %p101, %p102
      %p105 = scmp.ne.s32.totalorder %s88, %s104
      %p106 = scmp.eq.s32.totalorder %s36, 0
      %p107 = por %p105, %p106
      %s108 = ssub.s32 %s30, 2
      %p109 = scmp.gt.s32.totalorder %s108, 0
      %s110 = scalar_select %p109, %s108, 0
      %p111 = scmp.lt.s32.totalorder %s110, 0
      %s112 = scalar_select %p111, %s110, 0
      %s113 = ssub.s32 %s37, 2
      %p114 = scmp.gt.s32.totalorder %s113, 0
      %s115 = scalar_select %p114, %s113, 0
      %p116 = scmp.lt.s32.totalorder %s115, 0
      %s117 = scalar_select %p116, %s115, 0
      %s118 = ssub.s32 %s112, %s117
      %p119 = scmp.eq.s32.totalorder %s118, 0
      %s121 = sadd.s32 %s120, 1
      %s122 = scalar_select %p119, %s120, %s121
      %p125 = pneg %p119
      %p126 = scmp.eq.s32.totalorder %s30, 3
      %p127 = por %p125, %p126
      %p128 = scmp.ne.s32.totalorder %s120, %s123
      %p129 = scmp.eq.s32.totalorder %s30, 0
      %p130 = por %p128, %p129
      %p131 = scmp.ne.s32.totalorder %s120, %s123
      %p132 = scmp.eq.s32.totalorder %s35, 3
      %p133 = por %p131, %p132
      %p134 = scmp.ne.s32.totalorder %s123, %s124
      %p135 = scmp.eq.s32.totalorder %s35, 0
      %p136 = por %p134, %p135
      %p137 = scmp.ne.s32.totalorder %s123, %s124
      %p138 = scmp.eq.s32.totalorder %s36, 3
      %p139 = por %p137, %p138
      %p141 = scmp.ne.s32.totalorder %s124, %s140
      %p142 = scmp.eq.s32.totalorder %s36, 0
      %p143 = por %p141, %p142
      %s144 = ssub.s32 %s30, 3
      %p145 = scmp.gt.s32.totalorder %s144, 0
      %s146 = scalar_select %p145, %s144, 0
      %p147 = scmp.lt.s32.totalorder %s146, 0
      %s148 = scalar_select %p147, %s146, 0
      %s149 = ssub.s32 %s37, 3
      %p150 = scmp.gt.s32.totalorder %s149, 0
      %s151 = scalar_select %p150, %s149, 0
      %p152 = scmp.lt.s32.totalorder %s151, 0
      %s153 = scalar_select %p152, %s151, 0
      %s154 = ssub.s32 %s148, %s153
      %p155 = scmp.eq.s32.totalorder %s154, 0
      %s157 = sadd.s32 %s156, 1
      %s158 = scalar_select %p155, %s156, %s157
      %p161 = pneg %p155
      %p162 = scmp.eq.s32.totalorder %s30, 3
      %p163 = por %p161, %p162
      %p164 = scmp.ne.s32.totalorder %s156, %s159
      %p165 = scmp.eq.s32.totalorder %s30, 0
      %p166 = por %p164, %p165
      %p167 = scmp.ne.s32.totalorder %s156, %s159
      %p168 = scmp.eq.s32.totalorder %s35, 3
      %p169 = por %p167, %p168
      %p170 = scmp.ne.s32.totalorder %s159, %s160
      %p171 = scmp.eq.s32.totalorder %s35, 0
      %p172 = por %p170, %p171
      %p173 = scmp.ne.s32.totalorder %s159, %s160
      %p174 = scmp.eq.s32.totalorder %s36, 3
      %p175 = por %p173, %p174
      %p177 = scmp.ne.s32.totalorder %s160, %s176
      %p178 = scmp.eq.s32.totalorder %s36, 0
      %p179 = por %p177, %p178
      %p180 = scmp.gt.s32.totalorder %s30, 0
      %s181 = scalar_select %p180, %s30, 0
      %p182 = scmp.lt.s32.totalorder %s181, 0
      %s183 = scalar_select %p182, %s181, 0
      %p184 = scmp.gt.s32.totalorder %s37, 0
      %s185 = scalar_select %p184, %s37, 0
      %p186 = scmp.lt.s32.totalorder %s185, 0
      %s187 = scalar_select %p186, %s185, 0
      %s188 = ssub.s32 %s183, %s187
      %p189 = scmp.eq.s32.totalorder %s188, 0
      %s191 = sadd.s32 %s190, 1
      %s192 = scalar_select %p189, %s190, %s191
      %p195 = pneg %p189
      %p196 = scmp.eq.s32.totalorder %s30, 3
      %p197 = por %p195, %p196
      %p198 = scmp.ne.s32.totalorder %s190, %s193
      %p199 = scmp.eq.s32.totalorder %s30, 0
      %p200 = por %p198, %p199
      %p201 = scmp.ne.s32.totalorder %s190, %s193
      %p202 = scmp.eq.s32.totalorder %s35, 3
      %p203 = por %p201, %p202
      %p204 = scmp.ne.s32.totalorder %s193, %s194
      %p205 = scmp.eq.s32.totalorder %s35, 0
      %p206 = por %p204, %p205
      %p207 = scmp.ne.s32.totalorder %s193, %s194
      %p208 = scmp.eq.s32.totalorder %s36, 3
      %p209 = por %p207, %p208
      %p211 = scmp.ne.s32.totalorder %s194, %s210
      %p212 = scmp.eq.s32.totalorder %s36, 0
      %p213 = por %p211, %p212
      %s214 = ssub.s32 %s30, 1
      %p215 = scmp.gt.s32.totalorder %s214, 0
      %s216 = scalar_select %p215, %s214, 0
      %p217 = scmp.lt.s32.totalorder %s216, 0
      %s218 = scalar_select %p217, %s216, 0
      %s219 = ssub.s32 %s37, 1
      %p220 = scmp.gt.s32.totalorder %s219, 0
      %s221 = scalar_select %p220, %s219, 0
      %p222 = scmp.lt.s32.totalorder %s221, 0
      %s223 = scalar_select %p222, %s221, 0
      %s224 = ssub.s32 %s218, %s223
      %p225 = scmp.eq.s32.totalorder %s224, 0
      %s227 = sadd.s32 %s226, 1
      %s228 = scalar_select %p225, %s226, %s227
      %p231 = pneg %p225
      %p232 = scmp.eq.s32.totalorder %s30, 3
      %p233 = por %p231, %p232
      %p234 = scmp.ne.s32.totalorder %s226, %s229
      %p235 = scmp.eq.s32.totalorder %s30, 0
      %p236 = por %p234, %p235
      %p237 = scmp.ne.s32.totalorder %s226, %s229
      %p238 = scmp.eq.s32.totalorder %s35, 3
      %p239 = por %p237, %p238
      %p240 = scmp.ne.s32.totalorder %s229, %s230
      %p241 = scmp.eq.s32.totalorder %s35, 0
      %p242 = por %p240, %p241
      %p243 = scmp.ne.s32.totalorder %s229, %s230
      %p244 = scmp.eq.s32.totalorder %s36, 3
      %p245 = por %p243, %p244
      %p247 = scmp.ne.s32.totalorder %s230, %s246
      %p248 = scmp.eq.s32.totalorder %s36, 0
      %p249 = por %p247, %p248
      %s250 = ssub.s32 %s30, 2
      %p251 = scmp.gt.s32.totalorder %s250, 0
      %s252 = scalar_select %p251, %s250, 0
      %p253 = scmp.lt.s32.totalorder %s252, 0
      %s254 = scalar_select %p253, %s252, 0
      %s255 = ssub.s32 %s37, 2
      %p256 = scmp.gt.s32.totalorder %s255, 0
      %s257 = scalar_select %p256, %s255, 0
      %p258 = scmp.lt.s32.totalorder %s257, 0
      %s259 = scalar_select %p258, %s257, 0
      %s260 = ssub.s32 %s254, %s259
      %p261 = scmp.eq.s32.totalorder %s260, 0
      %s263 = sadd.s32 %s262, 1
      %s264 = scalar_select %p261, %s262, %s263
      %p267 = pneg %p261
      %p268 = scmp.eq.s32.totalorder %s30, 3
      %p269 = por %p267, %p268
      %p270 = scmp.ne.s32.totalorder %s262, %s265
      %p271 = scmp.eq.s32.totalorder %s30, 0
      %p272 = por %p270, %p271
      %p273 = scmp.ne.s32.totalorder %s262, %s265
      %p274 = scmp.eq.s32.totalorder %s35, 3
      %p275 = por %p273, %p274
      %p276 = scmp.ne.s32.totalorder %s265, %s266
      %p277 = scmp.eq.s32.totalorder %s35, 0
      %p278 = por %p276, %p277
      %p279 = scmp.ne.s32.totalorder %s265, %s266
      %p280 = scmp.eq.s32.totalorder %s36, 3
      %p281 = por %p279, %p280
      %p283 = scmp.ne.s32.totalorder %s266, %s282
      %p284 = scmp.eq.s32.totalorder %s36, 0
      %p285 = por %p283, %p284
      %s286 = ssub.s32 %s30, 3
      %p287 = scmp.gt.s32.totalorder %s286, 0
      %s288 = scalar_select %p287, %s286, 0
      %p289 = scmp.lt.s32.totalorder %s288, 0
      %s290 = scalar_select %p289, %s288, 0
      %s291 = ssub.s32 %s37, 3
      %p292 = scmp.gt.s32.totalorder %s291, 0
      %s293 = scalar_select %p292, %s291, 0
      %p294 = scmp.lt.s32.totalorder %s293, 0
      %s295 = scalar_select %p294, %s293, 0
      %s296 = ssub.s32 %s290, %s295
      %p297 = scmp.eq.s32.totalorder %s296, 0
      %s299 = sadd.s32 %s298, 1
      %s300 = scalar_select %p297, %s298, %s299
      %p303 = pneg %p297
      %p304 = scmp.eq.s32.totalorder %s30, 3
      %p305 = por %p303, %p304
      %p306 = scmp.ne.s32.totalorder %s298, %s301
      %p307 = scmp.eq.s32.totalorder %s30, 0
      %p308 = por %p306, %p307
      %p309 = scmp.ne.s32.totalorder %s298, %s301
      %p310 = scmp.eq.s32.totalorder %s35, 3
      %p311 = por %p309, %p310
      %p312 = scmp.ne.s32.totalorder %s301, %s302
      %p313 = scmp.eq.s32.totalorder %s35, 0
      %p314 = por %p312, %p313
      %p315 = scmp.ne.s32.totalorder %s301, %s302
      %p316 = scmp.eq.s32.totalorder %s36, 3
      %p317 = por %p315, %p316
      %p319 = scmp.ne.s32.totalorder %s302, %s318
      %p320 = scmp.eq.s32.totalorder %s36, 0
      %p321 = por %p319, %p320
      %s323 = sadd.s32 %s322, 1
      %p326 = scmp.eq.s32.totalorder %s30, 3
      %p327 = scmp.ne.s32.totalorder %s322, %s324
      %p328 = scmp.eq.s32.totalorder %s30, 0
      %p329 = por %p327, %p328
      %p330 = scmp.ne.s32.totalorder %s322, %s324
      %p331 = scmp.eq.s32.totalorder %s35, 3
      %p332 = por %p330, %p331
      %p333 = scmp.ne.s32.totalorder %s324, %s325
      %p334 = scmp.eq.s32.totalorder %s35, 0
      %p335 = por %p333, %p334
      %p336 = scmp.ne.s32.totalorder %s324, %s325
      %p337 = scmp.eq.s32.totalorder %s36, 3
      %p338 = por %p336, %p337
      %p340 = scmp.ne.s32.totalorder %s325, %s339
      %p341 = scmp.eq.s32.totalorder %s36, 0
      %p342 = por %p340, %p341
      %s344 = sadd.s32 %s343, 1
      %p347 = scmp.eq.s32.totalorder %s30, 3
      %p348 = scmp.ne.s32.totalorder %s343, %s345
      %p349 = scmp.eq.s32.totalorder %s30, 0
      %p350 = por %p348, %p349
      %p351 = scmp.ne.s32.totalorder %s343, %s345
      %p352 = scmp.eq.s32.totalorder %s35, 3
      %p353 = por %p351, %p352
      %p354 = scmp.ne.s32.totalorder %s345, %s346
      %p355 = scmp.eq.s32.totalorder %s35, 0
      %p356 = por %p354, %p355
      %p357 = scmp.ne.s32.totalorder %s345, %s346
      %p358 = scmp.eq.s32.totalorder %s36, 3
      %p359 = por %p357, %p358
      %p361 = scmp.ne.s32.totalorder %s346, %s360
      %p362 = scmp.eq.s32.totalorder %s36, 0
      %p363 = por %p361, %p362
      %s365 = sadd.s32 %s364, 1
      %p368 = scmp.eq.s32.totalorder %s30, 3
      %p369 = scmp.ne.s32.totalorder %s364, %s366
      %p370 = scmp.eq.s32.totalorder %s30, 0
      %p371 = por %p369, %p370
      %p372 = scmp.ne.s32.totalorder %s364, %s366
      %p373 = scmp.eq.s32.totalorder %s35, 3
      %p374 = por %p372, %p373
      %p375 = scmp.ne.s32.totalorder %s366, %s367
      %p376 = scmp.eq.s32.totalorder %s35, 0
      %p377 = por %p375, %p376
      %p378 = scmp.ne.s32.totalorder %s366, %s367
      %p379 = scmp.eq.s32.totalorder %s36, 3
      %p380 = por %p378, %p379
      %p382 = scmp.ne.s32.totalorder %s367, %s381
      %p383 = scmp.eq.s32.totalorder %s36, 0
      %p384 = por %p382, %p383
      %s386 = sadd.s32 %s385, 1
      %p389 = scmp.eq.s32.totalorder %s30, 3
      %p390 = scmp.ne.s32.totalorder %s385, %s387
      %p391 = scmp.eq.s32.totalorder %s30, 0
      %p392 = por %p390, %p391
      %p393 = scmp.ne.s32.totalorder %s385, %s387
      %p394 = scmp.eq.s32.totalorder %s35, 3
      %p395 = por %p393, %p394
      %p396 = scmp.ne.s32.totalorder %s387, %s388
      %p397 = scmp.eq.s32.totalorder %s35, 0
      %p398 = por %p396, %p397
      %p399 = scmp.ne.s32.totalorder %s387, %s388
      %p400 = scmp.eq.s32.totalorder %s36, 3
      %p401 = por %p399, %p400
      %p403 = scmp.ne.s32.totalorder %s388, %s402
      %p404 = scmp.eq.s32.totalorder %s36, 0
      %p405 = por %p403, %p404
      %p406 = scmp.le.s32.totalorder 1, %s30
      %p407 = scmp.lt.s32.totalorder %s30, 5
      %p408 = pnand %p406, %p407
      %p409 = pneg %p408
      // Predicated region
      $region9: #{tpu_custom_call.1} parent=5 // pred_check
        _
      $region10: #{tpu_custom_call.1} parent=5 // pred_check_branch
        %411 = sbr.rel (%p408) target = $region12
      $region11: #{tpu_custom_call.1} parent=5 // pred_region
        %s412 = ssub.s32 %s30, 1
      $region12: #{tpu_custom_call.1} parent=5 // pred_fallthru
        _
      %p413 = scmp.lt.s32.totalorder %s30, 4
      // Predicated region
      $region13: #{tpu_custom_call.1} parent=5 // pred_check
        %p414 = pneg %p413
      $region14: #{tpu_custom_call.1} parent=5 // pred_check_branch
        %416 = sbr.rel (%p414) target = $region16
      $region15: #{tpu_custom_call.1} parent=5 // pred_region
        // Predicated region
        $region17: #{tpu_custom_call.1} parent=15 // pred_check
          %p417 = pneg %p58
        $region18: #{tpu_custom_call.1} parent=15 // pred_check_branch
          %419 = sbr.rel (%p417) target = $region20
        $region19: #{tpu_custom_call.1} parent=15 // pred_region
          %s420 = sand.u32 %s48, 1
          %s421 = scalar_lea.sflag [#allocation3], %s420
          %s422 = sand.u32 %s48, 1
          %s423 = smul.addr %s422, 8
          %s424 = scalar_lea.vmem [#allocation2], %s423
          %p425 = scmp.gt.s32.totalorder %s30, 0
          %s426 = scalar_select %p425, %s30, 0
          %p427 = scmp.lt.s32.totalorder %s426, 0
          %s428 = scalar_select %p427, %s426, 0
          %s430 = ssub.s32 128, 128
          %431 = vsyncadd %s421, %s430
          %s432 = smul.addr %s428, 128
          %s433 = scalar_lea.hbm %s0, %s432
          %s435 = sshll.u32 %s424, 4
          %s436 = int_to_ptr.vmem [resolvable:$true] %s435
          %438 = dma.hbm_to_vmem [thread:$0]  %s433, 128, %s436, %s421
        $region20: #{tpu_custom_call.1} parent=15 // pred_fallthru
          _
        // Predicated region
        $region21: #{tpu_custom_call.1} parent=15 // pred_check
          %p439 = pneg %p94
        $region22: #{tpu_custom_call.1} parent=15 // pred_check_branch
          %441 = sbr.rel (%p439) target = $region24
        $region23: #{tpu_custom_call.1} parent=15 // pred_region
          %s442 = sand.u32 %s30, 1
          %s443 = scalar_lea.sflag [#allocation6], %s442
          %s444 = sand.u32 %s84, 1
          %s445 = smul.addr %s444, 8
          %s446 = scalar_lea.vmem [#allocation5], %s445
          %s447 = ssub.s32 %s30, 1
          %p448 = scmp.gt.s32.totalorder %s447, 0
          %s449 = scalar_select %p448, %s447, 0
          %p450 = scmp.lt.s32.totalorder %s449, 0
          %s451 = scalar_select %p450, %s449, 0
          %s453 = ssub.s32 128, 128
          %454 = vsyncadd %s443, %s453
          %s455 = smul.addr %s451, 128
          %s456 = scalar_lea.hbm %s1, %s455
          %s458 = sshll.u32 %s446, 4
          %s459 = int_to_ptr.vmem [resolvable:$true] %s458
          %461 = dma.hbm_to_vmem [thread:$0]  %s456, 128, %s459, %s443
        $region24: #{tpu_custom_call.1} parent=15 // pred_fallthru
          _
        // Predicated region
        $region25: #{tpu_custom_call.1} parent=15 // pred_check
          %p462 = pneg %p130
        $region26: #{tpu_custom_call.1} parent=15 // pred_check_branch
          %464 = sbr.rel (%p462) target = $region28
        $region27: #{tpu_custom_call.1} parent=15 // pred_region
          %s465 = sand.u32 %s30, 1
          %s466 = scalar_lea.sflag [#allocation6], %s465
          %s467 = sand.u32 %s120, 1
          %s468 = smul.addr %s467, 8
          %s469 = scalar_lea.vmem [#allocation7], %s468
          %s470 = ssub.s32 %s30, 2
          %p471 = scmp.gt.s32.totalorder %s470, 0
          %s472 = scalar_select %p471, %s470, 0
          %p473 = scmp.lt.s32.totalorder %s472, 0
          %s474 = scalar_select %p473, %s472, 0
          %s476 = ssub.s32 128, 128
          %477 = vsyncadd %s466, %s476
          %s478 = smul.addr %s474, 128
          %s479 = scalar_lea.hbm %s2, %s478
          %s481 = sshll.u32 %s469, 4
          %s482 = int_to_ptr.vmem [resolvable:$true] %s481
          %484 = dma.hbm_to_vmem [thread:$0]  %s479, 128, %s482, %s466
        $region28: #{tpu_custom_call.1} parent=15 // pred_fallthru
          _
        // Predicated region
        $region29: #{tpu_custom_call.1} parent=15 // pred_check
          %p485 = pneg %p166
        $region30: #{tpu_custom_call.1} parent=15 // pred_check_branch
          %487 = sbr.rel (%p485) target = $region32
        $region31: #{tpu_custom_call.1} parent=15 // pred_region
          %s488 = ssub.s32 %s30, 3
          %p489 = scmp.gt.s32.totalorder %s488, 0
          %s490 = scalar_select %p489, %s488, 0
          %p491 = scmp.lt.s32.totalorder %s490, 0
          %s492 = scalar_select %p491, %s490, 0
          %p493 = scmp.lt.s32.totalorder %s492, 0
          %s494 = scalar_select %p493, %s492, 0
          %s495 = smul.addr %s494, 8
          %s496 = scalar_lea.vmem %s3, %s495
          %s497 = ssub.s32 %s30, 3
          %p498 = scmp.gt.s32.totalorder %s497, 0
          %s499 = scalar_select %p498, %s497, 0
          %p500 = scmp.lt.s32.totalorder %s499, 0
          %s501 = scalar_select %p500, %s499, 0
        $region32: #{tpu_custom_call.1} parent=15 // pred_fallthru
          _
        // Predicated region
        $region33: #{tpu_custom_call.1} parent=15 // pred_check
          %p502 = pneg %p200
        $region34: #{tpu_custom_call.1} parent=15 // pred_check_branch
          %504 = sbr.rel (%p502) target = $region36
        $region35: #{tpu_custom_call.1} parent=15 // pred_region
          %s505 = sand.u32 %s30, 1
          %s506 = scalar_lea.sflag [#allocation9], %s505
          %s507 = sand.u32 %s190, 1
          %s508 = smul.addr %s507, 8
          %s509 = scalar_lea.vmem [#allocation8], %s508
          %p510 = scmp.gt.s32.totalorder %s30, 0
          %s511 = scalar_select %p510, %s30, 0
          %p512 = scmp.lt.s32.totalorder %s511, 0
          %s513 = scalar_select %p512, %s511, 0
          %s515 = ssub.s32 128, 128
          %516 = vsyncadd %s506, %s515
          %s517 = smul.addr %s513, 128
          %s518 = scalar_lea.hbm %s4, %s517
          %s520 = sshll.u32 %s509, 4
          %s521 = int_to_ptr.vmem [resolvable:$true] %s520
          %523 = dma.hbm_to_vmem [thread:$0]  %s518, 128, %s521, %s506
        $region36: #{tpu_custom_call.1} parent=15 // pred_fallthru
          _
        // Predicated region
        $region37: #{tpu_custom_call.1} parent=15 // pred_check
          %p524 = pneg %p236
        $region38: #{tpu_custom_call.1} parent=15 // pred_check_branch
          %526 = sbr.rel (%p524) target = $region40
        $region39: #{tpu_custom_call.1} parent=15 // pred_region
          %s527 = ssub.s32 %s30, 1
          %p528 = scmp.gt.s32.totalorder %s527, 0
          %s529 = scalar_select %p528, %s527, 0
          %p530 = scmp.lt.s32.totalorder %s529, 0
          %s531 = scalar_select %p530, %s529, 0
          %p532 = scmp.lt.s32.totalorder %s531, 0
          %s533 = scalar_select %p532, %s531, 0
          %s534 = smul.addr %s533, 8
          %s535 = scalar_lea.vmem %s5, %s534
          %s536 = ssub.s32 %s30, 1
          %p537 = scmp.gt.s32.totalorder %s536, 0
          %s538 = scalar_select %p537, %s536, 0
          %p539 = scmp.lt.s32.totalorder %s538, 0
          %s540 = scalar_select %p539, %s538, 0
        $region40: #{tpu_custom_call.1} parent=15 // pred_fallthru
          _
        // Predicated region
        $region41: #{tpu_custom_call.1} parent=15 // pred_check
          %p541 = pneg %p272
        $region42: #{tpu_custom_call.1} parent=15 // pred_check_branch
          %543 = sbr.rel (%p541) target = $region44
        $region43: #{tpu_custom_call.1} parent=15 // pred_region
          %s544 = sand.u32 %s30, 1
          %s545 = scalar_lea.sflag [#allocation9], %s544
          %s546 = sand.u32 %s262, 1
          %s547 = smul.addr %s546, 8
          %s548 = scalar_lea.vmem [#allocation10], %s547
          %s549 = ssub.s32 %s30, 2
          %p550 = scmp.gt.s32.totalorder %s549, 0
          %s551 = scalar_select %p550, %s549, 0
          %p552 = scmp.lt.s32.totalorder %s551, 0
          %s553 = scalar_select %p552, %s551, 0
          %s555 = ssub.s32 128, 128
          %556 = vsyncadd %s545, %s555
          %s557 = smul.addr %s553, 128
          %s558 = scalar_lea.hbm %s6, %s557
          %s560 = sshll.u32 %s548, 4
          %s561 = int_to_ptr.vmem [resolvable:$true] %s560
          %563 = dma.hbm_to_vmem [thread:$0]  %s558, 128, %s561, %s545
        $region44: #{tpu_custom_call.1} parent=15 // pred_fallthru
          _
        // Predicated region
        $region45: #{tpu_custom_call.1} parent=15 // pred_check
          %p564 = pneg %p308
        $region46: #{tpu_custom_call.1} parent=15 // pred_check_branch
          %566 = sbr.rel (%p564) target = $region48
        $region47: #{tpu_custom_call.1} parent=15 // pred_region
          %s567 = ssub.s32 %s30, 3
          %p568 = scmp.gt.s32.totalorder %s567, 0
          %s569 = scalar_select %p568, %s567, 0
          %p570 = scmp.lt.s32.totalorder %s569, 0
          %s571 = scalar_select %p570, %s569, 0
          %p572 = scmp.lt.s32.totalorder %s571, 0
          %s573 = scalar_select %p572, %s571, 0
          %s574 = smul.addr %s573, 8
          %s575 = scalar_lea.vmem %s7, %s574
          %s576 = ssub.s32 %s30, 3
          %p577 = scmp.gt.s32.totalorder %s576, 0
          %s578 = scalar_select %p577, %s576, 0
          %p579 = scmp.lt.s32.totalorder %s578, 0
          %s580 = scalar_select %p579, %s578, 0
        $region48: #{tpu_custom_call.1} parent=15 // pred_fallthru
          _
      $region16: #{tpu_custom_call.1} parent=5 // pred_fallthru
        _
      %p581 = scmp.le.s32.totalorder 1, %s30
      %p582 = scmp.lt.s32.totalorder %s30, 5
      %p583 = pnand %p581, %p582
      %p584 = pneg %p583
      // Predicated region
      $region49: #{tpu_custom_call.1} parent=5 // pred_check
        _
      $region50: #{tpu_custom_call.1} parent=5 // pred_check_branch
        %586 = sbr.rel (%p583) target = $region52
      $region51: #{tpu_custom_call.1} parent=5 // pred_region
        %s587 = ssub.s32 %s30, 1
        %s588 = sand.u32 %s51, 1
        %s589 = scalar_lea.sflag [#allocation3], %s588
        %s590 = sand.u32 %s51, 1
        %s591 = smul.addr %s590, 8
        %s592 = scalar_lea.vmem [#allocation2], %s591
        // Predicated region
        $region53: #{tpu_custom_call.1} parent=51 // pred_check
          %p593 = pneg %p64
        $region54: #{tpu_custom_call.1} parent=51 // pred_check_branch
          %595 = sbr.rel (%p593) target = $region56
        $region55: #{tpu_custom_call.1} parent=51 // pred_region
          %596 = dma.done %s589, 128
        $region56: #{tpu_custom_call.1} parent=51 // pred_fallthru
          _
        %s597 = sand.u32 %s35, 1
        %s598 = scalar_lea.sflag [#allocation6], %s597
        %s599 = sand.u32 %s87, 1
        %s600 = smul.addr %s599, 8
        %s601 = scalar_lea.vmem [#allocation5], %s600
        // Predicated region
        $region57: #{tpu_custom_call.1} parent=51 // pred_check
          %p602 = pneg %p100
        $region58: #{tpu_custom_call.1} parent=51 // pred_check_branch
          %604 = sbr.rel (%p602) target = $region60
        $region59: #{tpu_custom_call.1} parent=51 // pred_region
          %605 = dma.done %s598, 128
        $region60: #{tpu_custom_call.1} parent=51 // pred_fallthru
          _
        %s606 = sand.u32 %s35, 1
        %s607 = scalar_lea.sflag [#allocation6], %s606
        %s608 = sand.u32 %s123, 1
        %s609 = smul.addr %s608, 8
        %s610 = scalar_lea.vmem [#allocation7], %s609
        // Predicated region
        $region61: #{tpu_custom_call.1} parent=51 // pred_check
          %p611 = pneg %p136
        $region62: #{tpu_custom_call.1} parent=51 // pred_check_branch
          %613 = sbr.rel (%p611) target = $region64
        $region63: #{tpu_custom_call.1} parent=51 // pred_region
          %614 = dma.done %s607, 128
        $region64: #{tpu_custom_call.1} parent=51 // pred_fallthru
          _
        %s615 = sand.u32 %s35, 1
        %s616 = scalar_lea.sflag [#allocation9], %s615
        %s617 = sand.u32 %s193, 1
        %s618 = smul.addr %s617, 8
        %s619 = scalar_lea.vmem [#allocation8], %s618
        // Predicated region
        $region65: #{tpu_custom_call.1} parent=51 // pred_check
          %p620 = pneg %p206
        $region66: #{tpu_custom_call.1} parent=51 // pred_check_branch
          %622 = sbr.rel (%p620) target = $region68
        $region67: #{tpu_custom_call.1} parent=51 // pred_region
          %623 = dma.done %s616, 128
        $region68: #{tpu_custom_call.1} parent=51 // pred_fallthru
          _
        %s624 = sand.u32 %s35, 1
        %s625 = scalar_lea.sflag [#allocation9], %s624
        %s626 = sand.u32 %s265, 1
        %s627 = smul.addr %s626, 8
        %s628 = scalar_lea.vmem [#allocation10], %s627
        // Predicated region
        $region69: #{tpu_custom_call.1} parent=51 // pred_check
          %p629 = pneg %p278
        $region70: #{tpu_custom_call.1} parent=51 // pred_check_branch
          %631 = sbr.rel (%p629) target = $region72
        $region71: #{tpu_custom_call.1} parent=51 // pred_region
          %632 = dma.done %s625, 128
        $region72: #{tpu_custom_call.1} parent=51 // pred_fallthru
          _
        %s633 = sand.u32 %s51, 1
        %s634 = scalar_lea.sflag [#allocation3], %s633
        %s635 = sand.u32 %s51, 1
        %s636 = smul.addr %s635, 8
        %s637 = scalar_lea.vmem [#allocation2], %s636
        %p638 = pneg %p64
        %p639 = pneg %p61
        %s640 = sand.u32 %s35, 1
        %s641 = scalar_lea.sflag [#allocation6], %s640
        %s642 = sand.u32 %s87, 1
        %s643 = smul.addr %s642, 8
        %s644 = scalar_lea.vmem [#allocation5], %s643
        %p645 = pneg %p100
        %p646 = pneg %p97
        %s647 = sand.u32 %s35, 1
        %s648 = scalar_lea.sflag [#allocation6], %s647
        %s649 = sand.u32 %s123, 1
        %s650 = smul.addr %s649, 8
        %s651 = scalar_lea.vmem [#allocation7], %s650
        %p652 = pneg %p136
        %p653 = pneg %p133
        %s654 = ssub.s32 %s35, 3
        %p655 = scmp.gt.s32.totalorder %s654, 0
        %s656 = scalar_select %p655, %s654, 0
        %p657 = scmp.lt.s32.totalorder %s656, 0
        %s658 = scalar_select %p657, %s656, 0
        %p659 = scmp.lt.s32.totalorder %s658, 0
        %s660 = scalar_select %p659, %s658, 0
        %s661 = smul.addr %s660, 8
        %s662 = scalar_lea.vmem %s3, %s661
        %p663 = pneg %p172
        %p664 = pneg %p169
        %s665 = sand.u32 %s35, 1
        %s666 = scalar_lea.sflag [#allocation9], %s665
        %s667 = sand.u32 %s193, 1
        %s668 = smul.addr %s667, 8
        %s669 = scalar_lea.vmem [#allocation8], %s668
        %p670 = pneg %p206
        %p671 = pneg %p203
        %s672 = ssub.s32 %s35, 1
        %p673 = scmp.gt.s32.totalorder %s672, 0
        %s674 = scalar_select %p673, %s672, 0
        %p675 = scmp.lt.s32.totalorder %s674, 0
        %s676 = scalar_select %p675, %s674, 0
        %p677 = scmp.lt.s32.totalorder %s676, 0
        %s678 = scalar_select %p677, %s676, 0
        %s679 = smul.addr %s678, 8
        %s680 = scalar_lea.vmem %s5, %s679
        %p681 = pneg %p242
        %p682 = pneg %p239
        %s683 = sand.u32 %s35, 1
        %s684 = scalar_lea.sflag [#allocation9], %s683
        %s685 = sand.u32 %s265, 1
        %s686 = smul.addr %s685, 8
        %s687 = scalar_lea.vmem [#allocation10], %s686
        %p688 = pneg %p278
        %p689 = pneg %p275
        %s690 = ssub.s32 %s35, 3
        %p691 = scmp.gt.s32.totalorder %s690, 0
        %s692 = scalar_select %p691, %s690, 0
        %p693 = scmp.lt.s32.totalorder %s692, 0
        %s694 = scalar_select %p693, %s692, 0
        %p695 = scmp.lt.s32.totalorder %s694, 0
        %s696 = scalar_select %p695, %s694, 0
        %s697 = smul.addr %s696, 8
        %s698 = scalar_lea.vmem %s7, %s697
        %p699 = pneg %p314
        %p700 = pneg %p311
        %p701 = pneg %p335
        %p702 = pneg %p332
        %p703 = pneg %p356
        %p704 = pneg %p353
        %p705 = pneg %p377
        %p706 = pneg %p374
        %p707 = pneg %p398
        %p708 = pneg %p395
        %p709 = scmp.gt.s32.totalorder %s35, 0
        %s710 = scalar_select %p709, %s35, 0
        %p711 = scmp.lt.s32.totalorder %s710, 0
        %s712 = scalar_select %p711, %s710, 0
        %s713 = ssub.s32 %s35, 1
        %p714 = scmp.gt.s32.totalorder %s713, 0
        %s715 = scalar_select %p714, %s713, 0
        %p716 = scmp.lt.s32.totalorder %s715, 0
        %s717 = scalar_select %p716, %s715, 0
        %s718 = ssub.s32 %s35, 2
        %p719 = scmp.gt.s32.totalorder %s718, 0
        %s720 = scalar_select %p719, %s718, 0
        %p721 = scmp.lt.s32.totalorder %s720, 0
        %s722 = scalar_select %p721, %s720, 0
        %s723 = ssub.s32 %s35, 3
        %p724 = scmp.gt.s32.totalorder %s723, 0
        %s725 = scalar_select %p724, %s723, 0
        %p726 = scmp.lt.s32.totalorder %s725, 0
        %s727 = scalar_select %p726, %s725, 0
        %p728 = scmp.lt.s32.totalorder %s727, 0
        %s729 = scalar_select %p728, %s727, 0
        %s730 = smul.addr %s729, 8
        %s731 = scalar_lea.vmem %s3, %s730
        %s732 = ssub.s32 %s35, 3
        %p733 = scmp.gt.s32.totalorder %s732, 0
        %s734 = scalar_select %p733, %s732, 0
        %p735 = scmp.lt.s32.totalorder %s734, 0
        %s736 = scalar_select %p735, %s734, 0
        %p737 = scmp.gt.s32.totalorder %s35, 0
        %s738 = scalar_select %p737, %s35, 0
        %p739 = scmp.lt.s32.totalorder %s738, 0
        %s740 = scalar_select %p739, %s738, 0
        %s741 = ssub.s32 %s35, 1
        %p742 = scmp.gt.s32.totalorder %s741, 0
        %s743 = scalar_select %p742, %s741, 0
        %p744 = scmp.lt.s32.totalorder %s743, 0
        %s745 = scalar_select %p744, %s743, 0
        %p746 = scmp.lt.s32.totalorder %s745, 0
        %s747 = scalar_select %p746, %s745, 0
        %s748 = smul.addr %s747, 8
        %s749 = scalar_lea.vmem %s5, %s748
        %s750 = ssub.s32 %s35, 1
        %p751 = scmp.gt.s32.totalorder %s750, 0
        %s752 = scalar_select %p751, %s750, 0
        %p753 = scmp.lt.s32.totalorder %s752, 0
        %s754 = scalar_select %p753, %s752, 0
        %s755 = ssub.s32 %s35, 2
        %p756 = scmp.gt.s32.totalorder %s755, 0
        %s757 = scalar_select %p756, %s755, 0
        %p758 = scmp.lt.s32.totalorder %s757, 0
        %s759 = scalar_select %p758, %s757, 0
        %s760 = ssub.s32 %s35, 3
        %p761 = scmp.gt.s32.totalorder %s760, 0
        %s762 = scalar_select %p761, %s760, 0
        %p763 = scmp.lt.s32.totalorder %s762, 0
        %s764 = scalar_select %p763, %s762, 0
        %p765 = scmp.lt.s32.totalorder %s764, 0
        %s766 = scalar_select %p765, %s764, 0
        %s767 = smul.addr %s766, 8
        %s768 = scalar_lea.vmem %s7, %s767
        %s769 = ssub.s32 %s35, 3
        %p770 = scmp.gt.s32.totalorder %s769, 0
        %s771 = scalar_select %p770, %s769, 0
        %p772 = scmp.lt.s32.totalorder %s771, 0
        %s773 = scalar_select %p772, %s771, 0
        %p774 = scmp.eq.s32.totalorder %s35, 0
        // Predicated region
        $region73: #{tpu_custom_call.1} parent=51 // pred_check
          %p775 = pneg %p774
        $region74: #{tpu_custom_call.1} parent=51 // pred_check_branch
          %777 = sbr.rel (%p775) target = $region76
        $region75: #{tpu_custom_call.1} parent=51 // pred_region
          %778 = vst [vmem:[#allocation11] sm:$0xff] 0.0
          %779 = vst [vmem:[#allocation12] sm:$0xff] 0.0
          %780 = vst [vmem:[#allocation14] sm:$0xff] 0.0
          %781 = vst [vmem:[#allocation15] sm:$0xff] 0.0
        $region76: #{tpu_custom_call.1} parent=51 // pred_fallthru
          _
        %p782 = scmp.ge.s32.totalorder %s35, 0
        %p783 = scmp.lt.s32.totalorder %s35, 1
        %p784 = pnand %p782, %p783
        %p785 = pneg %p784
        // Predicated region
        $region77: #{tpu_custom_call.1} parent=51 // pred_check
          _
        $region78: #{tpu_custom_call.1} parent=51 // pred_check_branch
          %787 = sbr.rel (%p784) target = $region80
        $region79: #{tpu_custom_call.1} parent=51 // pred_region
          %v788 = vld [vmem:[%s592] sm:$0xff]
          %v789 = vld [vmem:[%s619] sm:$0xff]
          %v790 = vsub.f32 %v788, %v789
          %v791 = vand.u32 2147483647, %v790
          %vm792 = vcmp.lt.f32.partialorder %v791, 1.0
          %v793 = vmul.f32 %v790, 0.5
          %v794 = vmul.f32 %v793, %v790
          %v795 = vsub.f32 %v791, 0.5
          %v796 = vsel %vm792, %v794, %v795
          %v797 = vld [vmem:[#allocation11] sm:$0xff]
          %v798 = vadd.f32 %v796, 0.0
          %v799 = vadd.f32 %v797, %v798
          %800 = vst [vmem:[#allocation11] sm:$0xff] %v799
        $region80: #{tpu_custom_call.1} parent=51 // pred_fallthru
          _
        %p801 = scmp.ge.s32.totalorder %s35, 1
        %p802 = scmp.lt.s32.totalorder %s35, 2
        %p803 = pnand %p801, %p802
        %p804 = pneg %p803
        // Predicated region
        $region81: #{tpu_custom_call.1} parent=51 // pred_check
          _
        $region82: #{tpu_custom_call.1} parent=51 // pred_check_branch
          %806 = sbr.rel (%p803) target = $region84
        $region83: #{tpu_custom_call.1} parent=51 // pred_region
          %v807 = vld [vmem:[%s601] sm:$0xff]
          %v808 = vld [vmem:[%s749] sm:$0xff]
          %v809 = vsub.f32 %v807, %v808
          %v810 = vand.u32 2147483647, %v809
          %vm811 = vcmp.lt.f32.partialorder %v810, 1.0
          %v812 = vmul.f32 %v809, 0.5
          %v813 = vmul.f32 %v812, %v809
          %v814 = vsub.f32 %v810, 0.5
          %v815 = vsel %vm811, %v813, %v814
          %v816 = vld [vmem:[#allocation12] sm:$0xff]
          %v817 = vadd.f32 %v815, 0.0
          %v818 = vadd.f32 %v816, %v817
          %819 = vst [vmem:[#allocation12] sm:$0xff] %v818
        $region84: #{tpu_custom_call.1} parent=51 // pred_fallthru
          _
        %p820 = scmp.ge.s32.totalorder %s35, 2
        %p821 = scmp.lt.s32.totalorder %s35, 3
        %p822 = pnand %p820, %p821
        %p823 = pneg %p822
        // Predicated region
        $region85: #{tpu_custom_call.1} parent=51 // pred_check
          _
        $region86: #{tpu_custom_call.1} parent=51 // pred_check_branch
          %825 = sbr.rel (%p822) target = $region88
        $region87: #{tpu_custom_call.1} parent=51 // pred_region
          %v826 = vld [vmem:[%s610] sm:$0xff]
          %v827 = vld [vmem:[%s628] sm:$0xff]
          %v828 = vmax.f32 %v826, 0.0
          %v829 = vmul.f32 %v826, %v827
          %v830 = vsub.f32 %v828, %v829
          %v831 = vand.u32 2147483647, %v826
          %v832 = vsub.f32 0.0, %v831
          %v833 = vmul.f32 %v832, 1.442695
          %v834 = vpow.pop %v833
          %v835 = vadd.f32 %v834, 1.0
          %v836 = vlog2.pop %v835
          %v837 = vmul.f32 %v836, 0.6931472
          %v838 = vmul.f32 -0.5, %v834
          %v839 = vadd.f32 %v838, 1.0
          %v840 = vmul.f32 %v839, %v834
          %v841 = vand.u32 2147483647, %v834
          %vm842 = vcmp.lt.f32.partialorder %v841, 0.0004427343
          %v843 = vsel %vm842, %v840, %v837
          %v844 = vadd.f32 %v830, %v843
          %v845 = vld [vmem:[#allocation14] sm:$0xff]
          %v846 = vadd.f32 %v844, 0.0
          %v847 = vadd.f32 %v845, %v846
          %848 = vst [vmem:[#allocation14] sm:$0xff] %v847
        $region88: #{tpu_custom_call.1} parent=51 // pred_fallthru
          _
        %p849 = scmp.ge.s32.totalorder %s35, 3
        %p850 = scmp.lt.s32.totalorder %s35, 4
        %p851 = pnand %p849, %p850
        %p852 = pneg %p851
        // Predicated region
        $region89: #{tpu_custom_call.1} parent=51 // pred_check
          _
        $region90: #{tpu_custom_call.1} parent=51 // pred_check_branch
          %854 = sbr.rel (%p851) target = $region92
        $region91: #{tpu_custom_call.1} parent=51 // pred_region
          %v855 = vld [vmem:[%s731] sm:$0xff]
          %v856 = vld [vmem:[%s768] sm:$0xff]
          %v857 = vlog2.pop %v855
          %v858 = vmul.f32 %v857, 0.6931472
          %v859 = vmax.f32 %v858, -100.0
          %v860 = vsub.f32 0.0, %v855
          %v861 = vadd.f32 %v860, 1.0
          %v862 = vlog2.pop %v861
          %v863 = vmul.f32 %v862, 0.6931472
          %v864 = vmul.f32 -0.5, %v860
          %v865 = vadd.f32 %v864, 1.0
          %v866 = vmul.f32 %v865, %v860
          %v867 = vand.u32 2147483647, %v860
          %vm868 = vcmp.lt.f32.partialorder %v867, 0.0004427343
          %v869 = vsel %vm868, %v866, %v863
          %v870 = vmax.f32 %v869, -100.0
          %v871 = vmul.f32 %v856, %v859
          %v872 = vsub.f32 1.0, %v856
          %v873 = vmul.f32 %v872, %v870
          %v874 = vadd.f32 %v871, %v873
          %v875 = vsub.f32 0.0, %v874
          %v876 = vld [vmem:[#allocation15] sm:$0xff]
          %v877 = vadd.f32 %v875, 0.0
          %v878 = vadd.f32 %v876, %v877
          %879 = vst [vmem:[#allocation15] sm:$0xff] %v878
        $region92: #{tpu_custom_call.1} parent=51 // pred_fallthru
          _
        // Predicated region
        $region93: #{tpu_custom_call.1} parent=51 // pred_check
          %p880 = pneg %p332
        $region94: #{tpu_custom_call.1} parent=51 // pred_check_branch
          %882 = sbr.rel (%p880) target = $region96
        $region95: #{tpu_custom_call.1} parent=51 // pred_region
          %s884 = ssub.s32 128, 128
          %885 = vsyncadd [#allocation4], %s884
          %s887 = sshll.u32 [#allocation11], 4
          %s888 = int_to_ptr.vmem [resolvable:$true] %s887
          %890 = dma.vmem_to_hbm [thread:$0]  %s888, 128, %s8, [#allocation4]
        $region96: #{tpu_custom_call.1} parent=51 // pred_fallthru
          _
        // Predicated region
        $region97: #{tpu_custom_call.1} parent=51 // pred_check
          %p891 = pneg %p353
        $region98: #{tpu_custom_call.1} parent=51 // pred_check_branch
          %893 = sbr.rel (%p891) target = $region100
        $region99: #{tpu_custom_call.1} parent=51 // pred_region
          %s895 = ssub.s32 128, 128
          %896 = vsyncadd [#allocation13], %s895
          %s898 = sshll.u32 [#allocation12], 4
          %s899 = int_to_ptr.vmem [resolvable:$true] %s898
          %901 = dma.vmem_to_hbm [thread:$0]  %s899, 128, %s9, [#allocation13]
        $region100: #{tpu_custom_call.1} parent=51 // pred_fallthru
          _
        // Predicated region
        $region101: #{tpu_custom_call.1} parent=51 // pred_check
          %p902 = pneg %p374
        $region102: #{tpu_custom_call.1} parent=51 // pred_check_branch
          %904 = sbr.rel (%p902) target = $region104
        $region103: #{tpu_custom_call.1} parent=51 // pred_region
          %s906 = ssub.s32 128, 128
          %907 = vsyncadd [#allocation13], %s906
          %s909 = sshll.u32 [#allocation14], 4
          %s910 = int_to_ptr.vmem [resolvable:$true] %s909
          %912 = dma.vmem_to_hbm [thread:$0]  %s910, 128, %s10, [#allocation13]
        $region104: #{tpu_custom_call.1} parent=51 // pred_fallthru
          _
        // Predicated region
        $region105: #{tpu_custom_call.1} parent=51 // pred_check
          %p913 = pneg %p395
        $region106: #{tpu_custom_call.1} parent=51 // pred_check_branch
          %915 = sbr.rel (%p913) target = $region108
        $region107: #{tpu_custom_call.1} parent=51 // pred_region
          %s917 = ssub.s32 128, 128
          %918 = vsyncadd [#allocation16], %s917
          %s920 = sshll.u32 [#allocation15], 4
          %s921 = int_to_ptr.vmem [resolvable:$true] %s920
          %923 = dma.vmem_to_hbm [thread:$0]  %s921, 128, %s11, [#allocation16]
        $region108: #{tpu_custom_call.1} parent=51 // pred_fallthru
          _
        // Predicated region
        $region109: #{tpu_custom_call.1} parent=51 // pred_check
          %p924 = pneg %p332
        $region110: #{tpu_custom_call.1} parent=51 // pred_check_branch
          %926 = sbr.rel (%p924) target = $region112
        $region111: #{tpu_custom_call.1} parent=51 // pred_region
          %927 = dma.done [#allocation4], 128
        $region112: #{tpu_custom_call.1} parent=51 // pred_fallthru
          _
        // Predicated region
        $region113: #{tpu_custom_call.1} parent=51 // pred_check
          %p928 = pneg %p353
        $region114: #{tpu_custom_call.1} parent=51 // pred_check_branch
          %930 = sbr.rel (%p928) target = $region116
        $region115: #{tpu_custom_call.1} parent=51 // pred_region
          %931 = dma.done [#allocation13], 128
        $region116: #{tpu_custom_call.1} parent=51 // pred_fallthru
          _
        // Predicated region
        $region117: #{tpu_custom_call.1} parent=51 // pred_check
          %p932 = pneg %p374
        $region118: #{tpu_custom_call.1} parent=51 // pred_check_branch
          %934 = sbr.rel (%p932) target = $region120
        $region119: #{tpu_custom_call.1} parent=51 // pred_region
          %935 = dma.done [#allocation13], 128
        $region120: #{tpu_custom_call.1} parent=51 // pred_fallthru
          _
        // Predicated region
        $region121: #{tpu_custom_call.1} parent=51 // pred_check
          %p936 = pneg %p395
        $region122: #{tpu_custom_call.1} parent=51 // pred_check_branch
          %938 = sbr.rel (%p936) target = $region124
        $region123: #{tpu_custom_call.1} parent=51 // pred_region
          %939 = dma.done [#allocation16], 128
        $region124: #{tpu_custom_call.1} parent=51 // pred_fallthru
          _
      $region52: #{tpu_custom_call.1} parent=5 // pred_fallthru
        _
      %p940 = scmp.le.s32.totalorder 2, %s30
      // Predicated region
      $region125: #{tpu_custom_call.1} parent=5 // pred_check
        %p941 = pneg %p940
      $region126: #{tpu_custom_call.1} parent=5 // pred_check_branch
        %943 = sbr.rel (%p941) target = $region128
      $region127: #{tpu_custom_call.1} parent=5 // pred_region
        %s944 = ssub.s32 %s30, 2
      $region128: #{tpu_custom_call.1} parent=5 // pred_fallthru
        _
    $region6: #{tpu_custom_call.1} parent=1 // loop_footer
      %s34 = sadd.s32 1, %s30
    $region7: #{tpu_custom_call.1} parent=1 // loop_footer_branch
      %29 = sbr.rel target = $region3
    $region8: #{tpu_custom_call.1} parent=1 // loop_exit
      _
    %945 = vsyncpa [#allocation3], 1
    %s946 = scalar_lea.sflag [#allocation3], 1
    %947 = vsyncpa %s946, 1
    %948 = vsyncpa [#allocation6], 1
    %s949 = scalar_lea.sflag [#allocation6], 1
    %950 = vsyncpa %s949, 1
    %951 = vsyncpa [#allocation9], 1
    %s952 = scalar_lea.sflag [#allocation9], 1
    %953 = vsyncpa %s952, 1
    %954 = vsyncpa [#allocation4], 1
    %s955 = scalar_lea.sflag [#allocation4], 1
    %956 = vsyncpa %s955, 1
    %957 = vsyncpa [#allocation13], 1
    %958 = vsyncpa [#allocation16], 1

</llo_original>
